<compile_context>
chip_gen: v6e
topology: v6e:2x2x1
jax: 0.10.0
libtpu: 0.0.40
codegen_flags: <defaults>
</compile_context>

<pallas_src>
import jax
import jax.numpy as jnp
from jax.experimental import pallas as pl
from jax.experimental.pallas import tpu as pltpu

STATE_REP_SIZE = 16


def _round_up(x, m):
    return ((x + m - 1) // m) * m


def _icm_kernel(
    # data (batch-tiled)
    state_ref, next_state_ref, action_ref,
    # shared state_rep trunk params
    w1_ref, w2_ref, w3_ref, b12_ref, b3_ref,
    # fused head params
    wh1_ref, bh1_ref, wh2_ref, bh2_ref,
    # unpadded lane-dense output slab: [pred_action | pred_next_rep | next_rep]
    out_ref,
):
    f32 = jnp.float32
    tb = state_ref.shape[0]

    # Shared state_rep trunk, run ONCE per tile on [state_tile ; next_state_tile]
    # (sublane concat; tb is a multiple of 8 so this stays a vreg-level op).
    x = jnp.concatenate([state_ref[...], next_state_ref[...]], axis=0)      # (2*TB, obs)
    b12 = b12_ref[...]                                                      # (2, 64)
    h = jnp.maximum(jnp.dot(x, w1_ref[...], preferred_element_type=f32) + b12[0:1], 0.0)
    h = jnp.maximum(jnp.dot(h, w2_ref[...], preferred_element_type=f32) + b12[1:2], 0.0)
    rep = jnp.dot(h, w3_ref[...], preferred_element_type=f32) + b3_ref[...]  # (2*TB, 16)
    s_rep = rep[:tb]
    ns_rep = rep[tb:]

    # Fused heads:
    #   hidden = relu([s_rep | ns_rep | action] @ Wh1 + bh1)        (TB, 128)
    #   [pred_action | pred_next_rep] = hidden @ Wh2 + bh2          (TB, A+16)
    # with Wh1 = [[Wi1_s, Wf1_s], [Wi1_ns, 0], [0, Wf1_a]] and Wh2 = blkdiag(Wi2, Wf2).
    head_in = jnp.concatenate([s_rep, ns_rep, action_ref[...]], axis=1)     # (TB, 32+A)
    h_heads = jnp.maximum(
        jnp.dot(head_in, wh1_ref[...], preferred_element_type=f32) + bh1_ref[...], 0.0)
    head_out = jnp.dot(h_heads, wh2_ref[...], preferred_element_type=f32) + bh2_ref[...]

    # [pred_action | pred_next_rep | next_state_rep]  (single 2-piece lane concat)
    out_ref[...] = jnp.concatenate([head_out, ns_rep], axis=1)


def init_icm_params(key, obs_size, action_size):
    """Deterministic (PyTorch-Linear-style uniform) parameter init, weights as (in, out)."""
    def linear(key, fan_in, fan_out):
        kw, kb = jax.random.split(key)
        bound = 1.0 / jnp.sqrt(float(fan_in))
        w = jax.random.uniform(kw, (fan_in, fan_out), jnp.float32, -bound, bound)
        b = jax.random.uniform(kb, (1, fan_out), jnp.float32, -bound, bound)
        return w, b

    keys = jax.random.split(key, 7)
    params = {}
    # state_rep: obs -> 64 -> 64 -> 16
    params["w1"], params["b1"] = linear(keys[0], obs_size, 64)
    params["w2"], params["b2"] = linear(keys[1], 64, 64)
    params["w3"], params["b3"] = linear(keys[2], 64, STATE_REP_SIZE)
    # inverse model: 32 -> 64 -> action_size
    params["wi1"], params["bi1"] = linear(keys[3], 2 * STATE_REP_SIZE, 64)
    params["wi2"], params["bi2"] = linear(keys[4], 64, action_size)
    # forward model: 16 + action_size -> 64 -> 16
    params["wf1"], params["bf1"] = linear(keys[5], STATE_REP_SIZE + action_size, 64)
    params["wf2"], params["bf2"] = linear(keys[6], 64, STATE_REP_SIZE)
    return params


def prepare_icm_params(params, action_size):
    """One-time packing of the per-layer params into the fused resident buffers."""
    R = STATE_REP_SIZE
    A = action_size
    f32 = jnp.float32

    # Fused head first layer: [s_rep | ns_rep | action] (32+A) -> [h_inv | h_fwd] (128)
    wh1 = jnp.zeros((2 * R + A, 128), f32)
    wh1 = wh1.at[:R, :64].set(params["wi1"][:R].astype(f32))        # s_rep  -> inverse hidden
    wh1 = wh1.at[R:2 * R, :64].set(params["wi1"][R:].astype(f32))   # ns_rep -> inverse hidden
    wh1 = wh1.at[:R, 64:].set(params["wf1"][:R].astype(f32))        # s_rep  -> forward hidden
    wh1 = wh1.at[2 * R:, 64:].set(params["wf1"][R:].astype(f32))    # action -> forward hidden
    bh1 = jnp.concatenate([params["bi1"], params["bf1"]], axis=1)   # (1, 128)

    # Fused head second layer: block-diag(Wi2, Wf2): 128 -> (A + 16)
    wh2 = jnp.zeros((128, A + R), f32)
    wh2 = wh2.at[:64, :A].set(params["wi2"].astype(f32))
    wh2 = wh2.at[64:, A:].set(params["wf2"].astype(f32))
    bh2 = jnp.concatenate([params["bi2"], params["bf2"]], axis=1)   # (1, A+16)

    b12 = jnp.concatenate([params["b1"], params["b2"]], axis=0)     # (2, 64)

    return {
        "w1": params["w1"], "w2": params["w2"], "w3": params["w3"],
        "b12": b12, "b3": params["b3"],
        "wh1": wh1, "bh1": bh1, "wh2": wh2, "bh2": bh2,
    }


def icm_forward(state, next_state, action, prepared, *, block_batch=1024):
    batch, obs = state.shape
    A = action.shape[1]
    R = STATE_REP_SIZE
    out_w = A + 2 * R                           # unpadded output width (= full array last dim)

    # Batch tile: multiple of 8 sublanes, capped near half of the (8-padded) batch
    # so the grid has >= 2 steps whenever possible (v7x 2-TC sharding; no-op v5e/v6e).
    padded8 = _round_up(batch, 8)
    if padded8 >= 16:
        tb = min(block_batch, _round_up(padded8 // 2, 8))
    else:
        tb = min(block_batch, padded8)
    padded = _round_up(batch, tb)
    n_tiles = padded // tb
    if padded != batch:
        pad_rows = padded - batch
        state = jnp.pad(state, ((0, pad_rows), (0, 0)))
        next_state = jnp.pad(next_state, ((0, pad_rows), (0, 0)))
        action = jnp.pad(action, ((0, pad_rows), (0, 0)))

    weights = (
        prepared["w1"], prepared["w2"], prepared["w3"],
        prepared["b12"], prepared["b3"],
        prepared["wh1"], prepared["bh1"], prepared["wh2"], prepared["bh2"],
    )

    def resident(w):
        # Full-array block, constant index_map -> stays VMEM-resident across grid steps.
        return pl.BlockSpec(w.shape, lambda i, _nd=w.ndim: (0,) * _nd)

    in_specs = (
        [pl.BlockSpec((tb, obs), lambda i: (i, 0)),
         pl.BlockSpec((tb, obs), lambda i: (i, 0)),
         pl.BlockSpec((tb, A), lambda i: (i, 0))]
        + [resident(w) for w in weights]
    )
    out_spec = pl.BlockSpec((tb, out_w), lambda i: (i, 0))

    n_params = sum(int(w.size) for w in weights)
    flops = 2 * (
        2 * padded * (obs * 64 + 64 * 64 + 64 * R)        # shared trunk (both states)
        + padded * ((2 * R + A) * 128 + 128 * (A + R))    # fused heads
    )
    bytes_accessed = 4 * (padded * (2 * obs + A + out_w) + n_params)

    out = pl.pallas_call(
        _icm_kernel,
        out_shape=jax.ShapeDtypeStruct((padded, out_w), jnp.float32),
        grid=(n_tiles,),
        in_specs=in_specs,
        out_specs=out_spec,
        compiler_params=pltpu.CompilerParams(
            dimension_semantics=("parallel",)),
        cost_estimate=pl.CostEstimate(
            flops=flops, transcendentals=0, bytes_accessed=bytes_accessed),
    )(state, next_state, action, *weights)

    # Note: consumers that can use the packed (batch, A+32) slab directly should
    # take `out` as-is; the three slices below are kept to match the module API.
    pred_action = out[:batch, :A]
    pred_next_rep = out[:batch, A:A + R]
    next_rep = out[:batch, A + R:A + 2 * R]
    return pred_action, pred_next_rep, next_rep


def icm_reference(state, next_state, action, params):
    """Pure-JAX reference (mirrors the PyTorch module) for correctness check."""
    def state_rep(x):
        h = jnp.maximum(x @ params["w1"] + params["b1"], 0.0)
        h = jnp.maximum(h @ params["w2"] + params["b2"], 0.0)
        return h @ params["w3"] + params["b3"]

    s_rep = state_rep(state)
    ns_rep = state_rep(next_state)
    inv_in = jnp.concatenate([s_rep, ns_rep], axis=1)
    pred_action = jnp.maximum(inv_in @ params["wi1"] + params["bi1"], 0.0) @ params["wi2"] + params["bi2"]
    fwd_in = jnp.concatenate([s_rep, action], axis=1)
    pred_next = jnp.maximum(fwd_in @ params["wf1"] + params["bf1"], 0.0) @ params["wf2"] + params["bf2"]
    return pred_action, pred_next, ns_rep


if __name__ == "__main__":
    key = jax.random.PRNGKey(0)
    k_param = jax.random.fold_in(key, 999)

    obs_size = 32
    action_size = 8
    params = init_icm_params(k_param, obs_size, action_size)
    prepared = prepare_icm_params(params, action_size)

    # (batch, block_batch): single-tile small case, multi-tile with row padding,
    # and the default >=2-tile (v7x dual-TC) path.
    for batch, bb in ((8, 1024), (200, 64), (300, 1024)):
        k_s, k_ns, k_a = jax.random.split(jax.random.fold_in(key, batch), 3)
        state = jax.random.normal(k_s, (batch, obs_size), jnp.float32)
        next_state = jax.random.normal(k_ns, (batch, obs_size), jnp.float32)
        action = jax.random.normal(k_a, (batch, action_size), jnp.float32)

        pred_action, pred_next_rep, next_rep = jax.block_until_ready(
            icm_forward(state, next_state, action, prepared, block_batch=bb)
        )

        ref_pa, ref_pn, ref_nr = icm_reference(state, next_state, action, params)
        assert jnp.allclose(pred_action, ref_pa, atol=1e-4, rtol=1e-4)
        assert jnp.allclose(pred_next_rep, ref_pn, atol=1e-4, rtol=1e-4)
        assert jnp.allclose(next_rep, ref_nr, atol=1e-4, rtol=1e-4)

    print("KERNEL_OK")
</pallas_src>

<mosaic_0001>
module attributes {stable_mosaic.version = 11 : i64} {
  func.func @_icm_kernel(%arg0: i32, %arg1: memref<8x32xf32, #tpu.memory_space<vmem>>, %arg2: memref<8x32xf32, #tpu.memory_space<vmem>>, %arg3: memref<8x8xf32, #tpu.memory_space<vmem>>, %arg4: memref<32x64xf32, #tpu.memory_space<vmem>>, %arg5: memref<64x64xf32, #tpu.memory_space<vmem>>, %arg6: memref<64x16xf32, #tpu.memory_space<vmem>>, %arg7: memref<2x64xf32, #tpu.memory_space<vmem>>, %arg8: memref<1x16xf32, #tpu.memory_space<vmem>>, %arg9: memref<40x128xf32, #tpu.memory_space<vmem>>, %arg10: memref<1x128xf32, #tpu.memory_space<vmem>>, %arg11: memref<128x24xf32, #tpu.memory_space<vmem>>, %arg12: memref<1x24xf32, #tpu.memory_space<vmem>>, %arg13: memref<8x40xf32, #tpu.memory_space<vmem>>) attributes {dimension_semantics = [#tpu.dimension_semantics<parallel>], iteration_bounds = array<i64: 1>, scalar_prefetch = 0 : i64, scratch_operands = 0 : i64, tpu.core_type = #tpu.core_type<tc>, window_params = [{transform_indices = @transform_0, window_bounds = array<i64: 8, 32>}, {transform_indices = @transform_1, window_bounds = array<i64: 8, 32>}, {transform_indices = @transform_2, window_bounds = array<i64: 8, 8>}, {pipeline_mode = #tpu.pipeline_mode<synchronous>, transform_indices = @transform_3, window_bounds = array<i64: 32, 64>}, {pipeline_mode = #tpu.pipeline_mode<synchronous>, transform_indices = @transform_4, window_bounds = array<i64: 64, 64>}, {pipeline_mode = #tpu.pipeline_mode<synchronous>, transform_indices = @transform_5, window_bounds = array<i64: 64, 16>}, {pipeline_mode = #tpu.pipeline_mode<synchronous>, transform_indices = @transform_6, window_bounds = array<i64: 2, 64>}, {pipeline_mode = #tpu.pipeline_mode<synchronous>, transform_indices = @transform_7, window_bounds = array<i64: 1, 16>}, {pipeline_mode = #tpu.pipeline_mode<synchronous>, transform_indices = @transform_8, window_bounds = array<i64: 40, 128>}, {pipeline_mode = #tpu.pipeline_mode<synchronous>, transform_indices = @transform_9, window_bounds = array<i64: 1, 128>}, {pipeline_mode = #tpu.pipeline_mode<synchronous>, transform_indices = @transform_10, window_bounds = array<i64: 128, 24>}, {pipeline_mode = #tpu.pipeline_mode<synchronous>, transform_indices = @transform_11, window_bounds = array<i64: 1, 24>}, {transform_indices = @transform_12, window_bounds = array<i64: 8, 40>}]} {
    %c0 = arith.constant 0 : index
    %c0_0 = arith.constant 0 : index
    %0 = vector.load %arg1[%c0, %c0_0] : memref<8x32xf32, #tpu.memory_space<vmem>>, vector<8x32xf32>
    %c0_1 = arith.constant 0 : index
    %c0_2 = arith.constant 0 : index
    %1 = vector.load %arg2[%c0_1, %c0_2] : memref<8x32xf32, #tpu.memory_space<vmem>>, vector<8x32xf32>
    %2 = tpu.concatenate %0, %1 in 0 : vector<8x32xf32>, vector<8x32xf32> -> vector<16x32xf32>
    %c0_3 = arith.constant 0 : index
    %c0_4 = arith.constant 0 : index
    %3 = vector.load %arg7[%c0_3, %c0_4] : memref<2x64xf32, #tpu.memory_space<vmem>>, vector<2x64xf32>
    %c0_5 = arith.constant 0 : index
    %c0_6 = arith.constant 0 : index
    %4 = vector.load %arg4[%c0_5, %c0_6] : memref<32x64xf32, #tpu.memory_space<vmem>>, vector<32x64xf32>
    %cst = arith.constant dense<0.000000e+00> : vector<16x64xf32>
    %5 = tpu.matmul %2, %4, %cst {dimension_numbers = #tpu.dot_dimension_numbers<[1], [0], [0], [1], [0, 0, 1, 1], [], []>} : vector<16x32xf32>, vector<32x64xf32>, vector<16x64xf32> -> vector<16x64xf32>
    %6 = vector.extract_strided_slice %3 {offsets = [0, 0], sizes = [1, 64], strides = [1, 1]} : vector<2x64xf32> to vector<1x64xf32>
    %7 = vector.broadcast %6 : vector<1x64xf32> to vector<16x64xf32>
    %8 = arith.addf %5, %7 : vector<16x64xf32>
    %cst_7 = arith.constant 0.000000e+00 : f32
    %9 = vector.broadcast %cst_7 : f32 to vector<16x64xf32>
    %10 = arith.maximumf %8, %9 : vector<16x64xf32>
    %c0_8 = arith.constant 0 : index
    %c0_9 = arith.constant 0 : index
    %11 = vector.load %arg5[%c0_8, %c0_9] : memref<64x64xf32, #tpu.memory_space<vmem>>, vector<64x64xf32>
    %cst_10 = arith.constant dense<0.000000e+00> : vector<16x64xf32>
    %12 = tpu.matmul %10, %11, %cst_10 {dimension_numbers = #tpu.dot_dimension_numbers<[1], [0], [0], [1], [0, 0, 1, 1], [], []>} : vector<16x64xf32>, vector<64x64xf32>, vector<16x64xf32> -> vector<16x64xf32>
    %13 = vector.extract_strided_slice %3 {offsets = [1, 0], sizes = [1, 64], strides = [1, 1]} : vector<2x64xf32> to vector<1x64xf32>
    %14 = vector.broadcast %13 : vector<1x64xf32> to vector<16x64xf32>
    %15 = arith.addf %12, %14 : vector<16x64xf32>
    %cst_11 = arith.constant 0.000000e+00 : f32
    %16 = vector.broadcast %cst_11 : f32 to vector<16x64xf32>
    %17 = arith.maximumf %15, %16 : vector<16x64xf32>
    %c0_12 = arith.constant 0 : index
    %c0_13 = arith.constant 0 : index
    %18 = vector.load %arg6[%c0_12, %c0_13] : memref<64x16xf32, #tpu.memory_space<vmem>>, vector<64x16xf32>
    %cst_14 = arith.constant dense<0.000000e+00> : vector<16x16xf32>
    %19 = tpu.matmul %17, %18, %cst_14 {dimension_numbers = #tpu.dot_dimension_numbers<[1], [0], [0], [1], [0, 0, 1, 1], [], []>} : vector<16x64xf32>, vector<64x16xf32>, vector<16x16xf32> -> vector<16x16xf32>
    %c0_15 = arith.constant 0 : index
    %c0_16 = arith.constant 0 : index
    %20 = vector.load %arg8[%c0_15, %c0_16] : memref<1x16xf32, #tpu.memory_space<vmem>>, vector<1x16xf32>
    %21 = vector.broadcast %20 : vector<1x16xf32> to vector<16x16xf32>
    %22 = arith.addf %19, %21 : vector<16x16xf32>
    %23 = vector.extract_strided_slice %22 {offsets = [0, 0], sizes = [8, 16], strides = [1, 1]} : vector<16x16xf32> to vector<8x16xf32>
    %24 = vector.extract_strided_slice %22 {offsets = [8, 0], sizes = [8, 16], strides = [1, 1]} : vector<16x16xf32> to vector<8x16xf32>
    %c0_17 = arith.constant 0 : index
    %c0_18 = arith.constant 0 : index
    %25 = vector.load %arg3[%c0_17, %c0_18] : memref<8x8xf32, #tpu.memory_space<vmem>>, vector<8x8xf32>
    %26 = tpu.concatenate %23, %24, %25 in 1 : vector<8x16xf32>, vector<8x16xf32>, vector<8x8xf32> -> vector<8x40xf32>
    %c0_19 = arith.constant 0 : index
    %c0_20 = arith.constant 0 : index
    %27 = vector.load %arg9[%c0_19, %c0_20] : memref<40x128xf32, #tpu.memory_space<vmem>>, vector<40x128xf32>
    %cst_21 = arith.constant dense<0.000000e+00> : vector<8x128xf32>
    %28 = tpu.matmul %26, %27, %cst_21 {dimension_numbers = #tpu.dot_dimension_numbers<[1], [0], [0], [1], [0, 0, 1, 1], [], []>} : vector<8x40xf32>, vector<40x128xf32>, vector<8x128xf32> -> vector<8x128xf32>
    %c0_22 = arith.constant 0 : index
    %c0_23 = arith.constant 0 : index
    %29 = vector.load %arg10[%c0_22, %c0_23] : memref<1x128xf32, #tpu.memory_space<vmem>>, vector<1x128xf32>
    %30 = vector.broadcast %29 : vector<1x128xf32> to vector<8x128xf32>
    %31 = arith.addf %28, %30 : vector<8x128xf32>
    %cst_24 = arith.constant 0.000000e+00 : f32
    %32 = vector.broadcast %cst_24 : f32 to vector<8x128xf32>
    %33 = arith.maximumf %31, %32 : vector<8x128xf32>
    %c0_25 = arith.constant 0 : index
    %c0_26 = arith.constant 0 : index
    %34 = vector.load %arg11[%c0_25, %c0_26] : memref<128x24xf32, #tpu.memory_space<vmem>>, vector<128x24xf32>
    %cst_27 = arith.constant dense<0.000000e+00> : vector<8x24xf32>
    %35 = tpu.matmul %33, %34, %cst_27 {dimension_numbers = #tpu.dot_dimension_numbers<[1], [0], [0], [1], [0, 0, 1, 1], [], []>} : vector<8x128xf32>, vector<128x24xf32>, vector<8x24xf32> -> vector<8x24xf32>
    %c0_28 = arith.constant 0 : index
    %c0_29 = arith.constant 0 : index
    %36 = vector.load %arg12[%c0_28, %c0_29] : memref<1x24xf32, #tpu.memory_space<vmem>>, vector<1x24xf32>
    %37 = vector.broadcast %36 : vector<1x24xf32> to vector<8x24xf32>
    %38 = arith.addf %35, %37 : vector<8x24xf32>
    %39 = tpu.concatenate %38, %24 in 1 : vector<8x24xf32>, vector<8x16xf32> -> vector<8x40xf32>
    %c0_30 = arith.constant 0 : index
    %c0_31 = arith.constant 0 : index
    %40 = vector.load %arg13[%c0_30, %c0_31] : memref<8x40xf32, #tpu.memory_space<vmem>>, vector<8x40xf32>
    tpu.vector_store %arg13[%c0_30, %c0_31], %39 {strides = array<i32>} : memref<8x40xf32, #tpu.memory_space<vmem>>, vector<8x40xf32>,
    return
  }
  func.func @transform_0(%arg0: i32) -> (i32, i32) {
    %c0_i32 = arith.constant 0 : i32
    %c0_i32_0 = arith.constant 0 : i32
    return %arg0, %c0_i32 : i32, i32
  }
  func.func @transform_1(%arg0: i32) -> (i32, i32) {
    %c0_i32 = arith.constant 0 : i32
    %c0_i32_0 = arith.constant 0 : i32
    return %arg0, %c0_i32 : i32, i32
  }
  func.func @transform_2(%arg0: i32) -> (i32, i32) {
    %c0_i32 = arith.constant 0 : i32
    %c0_i32_0 = arith.constant 0 : i32
    return %arg0, %c0_i32 : i32, i32
  }
  func.func @transform_3(%arg0: i32) -> (i32, i32) {
    %c0_i32 = arith.constant 0 : i32
    %c0_i32_0 = arith.constant 0 : i32
    %c0_i32_1 = arith.constant 0 : i32
    return %c0_i32, %c0_i32_0 : i32, i32
  }
  func.func @transform_4(%arg0: i32) -> (i32, i32) {
    %c0_i32 = arith.constant 0 : i32
    %c0_i32_0 = arith.constant 0 : i32
    %c0_i32_1 = arith.constant 0 : i32
    return %c0_i32, %c0_i32_0 : i32, i32
  }
  func.func @transform_5(%arg0: i32) -> (i32, i32) {
    %c0_i32 = arith.constant 0 : i32
    %c0_i32_0 = arith.constant 0 : i32
    %c0_i32_1 = arith.constant 0 : i32
    return %c0_i32, %c0_i32_0 : i32, i32
  }
  func.func @transform_6(%arg0: i32) -> (i32, i32) {
    %c0_i32 = arith.constant 0 : i32
    %c0_i32_0 = arith.constant 0 : i32
    %c0_i32_1 = arith.constant 0 : i32
    return %c0_i32, %c0_i32_0 : i32, i32
  }
  func.func @transform_7(%arg0: i32) -> (i32, i32) {
    %c0_i32 = arith.constant 0 : i32
    %c0_i32_0 = arith.constant 0 : i32
    %c0_i32_1 = arith.constant 0 : i32
    return %c0_i32, %c0_i32_0 : i32, i32
  }
  func.func @transform_8(%arg0: i32) -> (i32, i32) {
    %c0_i32 = arith.constant 0 : i32
    %c0_i32_0 = arith.constant 0 : i32
    %c0_i32_1 = arith.constant 0 : i32
    return %c0_i32, %c0_i32_0 : i32, i32
  }
  func.func @transform_9(%arg0: i32) -> (i32, i32) {
    %c0_i32 = arith.constant 0 : i32
    %c0_i32_0 = arith.constant 0 : i32
    %c0_i32_1 = arith.constant 0 : i32
    return %c0_i32, %c0_i32_0 : i32, i32
  }
  func.func @transform_10(%arg0: i32) -> (i32, i32) {
    %c0_i32 = arith.constant 0 : i32
    %c0_i32_0 = arith.constant 0 : i32
    %c0_i32_1 = arith.constant 0 : i32
    return %c0_i32, %c0_i32_0 : i32, i32
  }
  func.func @transform_11(%arg0: i32) -> (i32, i32) {
    %c0_i32 = arith.constant 0 : i32
    %c0_i32_0 = arith.constant 0 : i32
    %c0_i32_1 = arith.constant 0 : i32
    return %c0_i32, %c0_i32_0 : i32, i32
  }
  func.func @transform_12(%arg0: i32) -> (i32, i32) {
    %c0_i32 = arith.constant 0 : i32
    %c0_i32_0 = arith.constant 0 : i32
    return %arg0, %c0_i32 : i32, i32
  }
}

</mosaic_0001>

<llo_original>
// kernel: tpu_custom_call.1
$region0: #{tpu_custom_call.1}
  #allocation0 [shape = 'u32[]', space=smem, size = 0x4, offset = 0x4, fixed_abs, tag = 'smem constant byte address 0x4 - core index']
  #allocation1 [shape = 'u32[144,128]{1,0:T(1,128)}', space=vmem, size = 0x12000, scoped, tag = 'internal scratch']
  %s0 = inlined_call_operand.vmem [shape: f32[8,32], index: 0, kind: input, shape index: {}]
  %s1 = inlined_call_operand.vmem [shape: f32[8,32], index: 1, kind: input, shape index: {}]
  %s2 = inlined_call_operand.vmem [shape: f32[8,8], index: 2, kind: input, shape index: {}]
  %s3 = inlined_call_operand.vmem [shape: f32[32,64], index: 3, kind: input, shape index: {}]
  %s4 = inlined_call_operand.vmem [shape: f32[64,64], index: 4, kind: input, shape index: {}]
  %s5 = inlined_call_operand.vmem [shape: f32[64,16], index: 5, kind: input, shape index: {}]
  %s6 = inlined_call_operand.vmem [shape: f32[2,64], index: 6, kind: input, shape index: {}]
  %s7 = inlined_call_operand.vmem [shape: f32[1,16], index: 7, kind: input, shape index: {}]
  %s8 = inlined_call_operand.vmem [shape: f32[40,128], index: 8, kind: input, shape index: {}]
  %s9 = inlined_call_operand.vmem [shape: f32[1,128], index: 9, kind: input, shape index: {}]
  %s10 = inlined_call_operand.vmem [shape: f32[128,24], index: 10, kind: input, shape index: {}]
  %s11 = inlined_call_operand.vmem [shape: f32[1,24], index: 11, kind: input, shape index: {}]
  %s12 = inlined_call_operand.hbm [shape: f32[8,40], index: 12, kind: output, shape index: {}]
  %s13 = sld [smem:[#allocation0]]
  $region58: #{tpu_custom_call.1} parent=0
    _
  %s15 = ssub.s32 1, %s13
  %s16 = scalar_select 0, %s15, %s13
  $region1: #{tpu_custom_call.1} parent=0
    #allocation2 [shape = 'u8[4096]{0}', space=vmem, size = 0x1000, scoped, tag = 'output window, operand 0, single buffered']
    #allocation3 [shape = 's32[1]{0}', space=sflag, size = 0x4, scoped, tag = 'scoped memory for tpu_custom_call.1']
    %17 = vsyncpa [#allocation3], 0
    // Predicated region
    $region2: #{tpu_custom_call.1} parent=1 // pred_check
      _
    $region3: #{tpu_custom_call.1} parent=1 // pred_check_branch
      %19 = sbr.rel (0) target = $region5
    $region4: #{tpu_custom_call.1} parent=1 // pred_region
      _
    $region5: #{tpu_custom_call.1} parent=1 // pred_fallthru
      _
    // Predicated region
    $region6: #{tpu_custom_call.1} parent=1 // pred_check
      _
    $region7: #{tpu_custom_call.1} parent=1 // pred_check_branch
      %21 = sbr.rel (0) target = $region9
    $region8: #{tpu_custom_call.1} parent=1 // pred_region
      _
    $region9: #{tpu_custom_call.1} parent=1 // pred_fallthru
      _
    // Predicated region
    $region10: #{tpu_custom_call.1} parent=1 // pred_check
      _
    $region11: #{tpu_custom_call.1} parent=1 // pred_check_branch
      %23 = sbr.rel (0) target = $region13
    $region12: #{tpu_custom_call.1} parent=1 // pred_region
      _
    $region13: #{tpu_custom_call.1} parent=1 // pred_fallthru
      _
    // Predicated region
    $region14: #{tpu_custom_call.1} parent=1 // pred_check
      _
    $region15: #{tpu_custom_call.1} parent=1 // pred_check_branch
      %25 = sbr.rel (0) target = $region17
    $region16: #{tpu_custom_call.1} parent=1 // pred_region
      _
    $region17: #{tpu_custom_call.1} parent=1 // pred_fallthru
      _
    // Predicated region
    $region18: #{tpu_custom_call.1} parent=1 // pred_check
      _
    $region19: #{tpu_custom_call.1} parent=1 // pred_check_branch
      %27 = sbr.rel (0) target = $region21
    $region20: #{tpu_custom_call.1} parent=1 // pred_region
      _
    $region21: #{tpu_custom_call.1} parent=1 // pred_fallthru
      _
    // Predicated region
    $region22: #{tpu_custom_call.1} parent=1 // pred_check
      _
    $region23: #{tpu_custom_call.1} parent=1 // pred_check_branch
      %29 = sbr.rel (0) target = $region25
    $region24: #{tpu_custom_call.1} parent=1 // pred_region
      _
    $region25: #{tpu_custom_call.1} parent=1 // pred_fallthru
      _
    // Predicated region
    $region26: #{tpu_custom_call.1} parent=1 // pred_check
      _
    $region27: #{tpu_custom_call.1} parent=1 // pred_check_branch
      %31 = sbr.rel (0) target = $region29
    $region28: #{tpu_custom_call.1} parent=1 // pred_region
      _
    $region29: #{tpu_custom_call.1} parent=1 // pred_fallthru
      _
    // Predicated region
    $region30: #{tpu_custom_call.1} parent=1 // pred_check
      _
    $region31: #{tpu_custom_call.1} parent=1 // pred_check_branch
      %33 = sbr.rel (0) target = $region33
    $region32: #{tpu_custom_call.1} parent=1 // pred_region
      _
    $region33: #{tpu_custom_call.1} parent=1 // pred_fallthru
      _
    // Predicated region
    $region34: #{tpu_custom_call.1} parent=1 // pred_check
      _
    $region35: #{tpu_custom_call.1} parent=1 // pred_check_branch
      %35 = sbr.rel (0) target = $region37
    $region36: #{tpu_custom_call.1} parent=1 // pred_region
      _
    $region37: #{tpu_custom_call.1} parent=1 // pred_fallthru
      _
    // Predicated region
    $region38: #{tpu_custom_call.1} parent=1 // pred_check
      _
    $region39: #{tpu_custom_call.1} parent=1 // pred_check_branch
      %37 = sbr.rel (0) target = $region41
    $region40: #{tpu_custom_call.1} parent=1 // pred_region
      _
    $region41: #{tpu_custom_call.1} parent=1 // pred_fallthru
      _
    // Predicated region
    $region42: #{tpu_custom_call.1} parent=1 // pred_check
      _
    $region43: #{tpu_custom_call.1} parent=1 // pred_check_branch
      %39 = sbr.rel (0) target = $region45
    $region44: #{tpu_custom_call.1} parent=1 // pred_region
      _
    $region45: #{tpu_custom_call.1} parent=1 // pred_fallthru
      _
    // Predicated region
    $region46: #{tpu_custom_call.1} parent=1 // pred_check
      _
    $region47: #{tpu_custom_call.1} parent=1 // pred_check_branch
      %41 = sbr.rel (0) target = $region49
    $region48: #{tpu_custom_call.1} parent=1 // pred_region
      _
    $region49: #{tpu_custom_call.1} parent=1 // pred_fallthru
      _
    %v42 = vld [vmem:[%s0] sm:$0xff]
    %v43 = vld [vmem:[%s1] sm:$0xff]
    %v44 = vld [vmem:[%s6] sm:$0x3]
    %v45 = vld [vmem:[%s3] sm:$0xff]
    %v46 = vld [vmem:[%s3 + $0x8] sm:$0xff]
    %v47 = vld [vmem:[%s3 + $0x10] sm:$0xff]
    %v48 = vld [vmem:[%s3 + $0x18] sm:$0xff]
    %v49 = vlaneseq
    %v50 = vshrl.u32 %v49, 7
    %v51 = vsub.s32 0, %v50
    %v52 = vrot.slane %v44, %v51
    %vm53 = vcmask 261120
    %v55 = vsel %vm53, %v42, 0
    %v58 = vsel %vm53, %v43, 0
    %60 = vmatprep.subr.mxu0 0.0
    %61 = vmatpush1.msra.mxu0 0.0
    %62 = vmatprep.subr.mxu0 0.0
    %63 = vmatpush1.msra.mxu0 0.0
    %64 = vmatprep.subr.mxu0 0.0
    %65 = vmatpush1.msra.mxu0 0.0
    %66 = vmatprep.subr.mxu0 0.0
    %67 = vmatpush1.msra.mxu0 0.0
    %68 = vmatprep.subr.mxu0 0.0
    %69 = vmatpush1.msra.mxu0 0.0
    %70 = vmatprep.subr.mxu0 0.0
    %71 = vmatpush1.msra.mxu0 0.0
    %72 = vmatprep.subr.mxu0 0.0
    %73 = vmatpush1.msra.mxu0 0.0
    %74 = vmatprep.subr.mxu0 0.0
    %75 = vmatpush1.msra.mxu0 0.0
    %76 = vmatprep.subr.mxu0 0.0
    %77 = vmatpush1.msra.mxu0 0.0
    %78 = vmatprep.subr.mxu0 0.0
    %79 = vmatpush1.msra.mxu0 0.0
    %80 = vmatprep.subr.mxu0 0.0
    %81 = vmatpush1.msra.mxu0 0.0
    %82 = vmatprep.subr.mxu0 0.0
    %83 = vmatpush1.msra.mxu0 0.0
    %84 = vmatprep.subr.mxu0 0.0
    %85 = vmatpush1.msra.mxu0 %v48
    %86 = vmatprep.subr.mxu0 0.0
    %87 = vmatpush1.msra.mxu0 %v47
    %88 = vmatprep.subr.mxu0 0.0
    %89 = vmatpush1.msra.mxu0 %v46
    %90 = vmatprep.subr.mxu0 0.0
    %91 = vmatpush1.msra.mxu0 %v45
    %92 = vmatprep.subr.mxu0 0.0
    %93 = vmatpush2.msra.mxu0 0.0
    %94 = vmatprep.subr.mxu0 0.0
    %95 = vmatpush2.msra.mxu0 0.0
    %96 = vmatprep.subr.mxu0 0.0
    %97 = vmatpush2.msra.mxu0 0.0
    %98 = vmatprep.subr.mxu0 0.0
    %99 = vmatpush2.msra.mxu0 0.0
    %100 = vmatprep.subr.mxu0 0.0
    %101 = vmatpush2.msra.mxu0 0.0
    %102 = vmatprep.subr.mxu0 0.0
    %103 = vmatpush2.msra.mxu0 0.0
    %104 = vmatprep.subr.mxu0 0.0
    %105 = vmatpush2.msra.mxu0 0.0
    %106 = vmatprep.subr.mxu0 0.0
    %107 = vmatpush2.msra.mxu0 0.0
    %108 = vmatprep.subr.mxu0 0.0
    %109 = vmatpush2.msra.mxu0 0.0
    %110 = vmatprep.subr.mxu0 0.0
    %111 = vmatpush2.msra.mxu0 0.0
    %112 = vmatprep.subr.mxu0 0.0
    %113 = vmatpush2.msra.mxu0 0.0
    %114 = vmatprep.subr.mxu0 0.0
    %115 = vmatpush2.msra.mxu0 0.0
    %116 = vmatprep.subr.mxu0 0.0
    %117 = vmatpush2.msra.mxu0 0.0
    %118 = vmatprep.subr.mxu0 0.0
    %119 = vmatpush2.msra.mxu0 0.0
    %120 = vmatprep.subr.mxu0 0.0
    %121 = vmatpush2.msra.mxu0 0.0
    %122 = vmatprep.subr.mxu0 0.0
    %123 = vmatpush2.msra.mxu0 0.0
    %124 = vmatprep.mubr.f32.mxu0 0.0
    %125 = vmatmul.mubr.f32.gmra.mxu0 %v55
    %v126 = vpop.f32.mrf.mxu0
    %v127 = vadd.f32 %v52, %v126
    %v128 = vpop.f32.mrf.mxu0
    %129 = vmatprep.mubr.f32.mxu0 0.0
    %130 = vmatmul.mubr.f32.gmra.mxu0 %v58
    %v131 = vpop.f32.mrf.mxu0
    %v132 = vadd.f32 %v52, %v131
    %v133 = vpop.f32.mrf.mxu0
    %134 = vdwg.mxu0
    %v135 = vmax.f32 %v127, 0.0
    %v136 = vmax.f32 %v132, 0.0
    %v137 = vld [vmem:[%s4] sm:$0xff]
    %v138 = vld [vmem:[%s4 + $0x8] sm:$0xff]
    %v139 = vld [vmem:[%s4 + $0x10] sm:$0xff]
    %v140 = vld [vmem:[%s4 + $0x18] sm:$0xff]
    %v141 = vld [vmem:[%s4 + $0x20] sm:$0xff]
    %v142 = vld [vmem:[%s4 + $0x28] sm:$0xff]
    %v143 = vld [vmem:[%s4 + $0x30] sm:$0xff]
    %v144 = vld [vmem:[%s4 + $0x38] sm:$0xff]
    %v145 = vlaneseq
    %v146 = vshrl.u32 %v145, 7
    %v147 = vsub.s32 1, %v146
    %v148 = vrot.slane %v44, %v147
    %vm149 = vcmask 523264
    %v151 = vsel %vm149, %v135, 0
    %v154 = vsel %vm149, %v136, 0
    %156 = vmatprep.subr.mxu0 0.0
    %157 = vmatpush1.msra.mxu0 0.0
    %158 = vmatprep.subr.mxu0 0.0
    %159 = vmatpush1.msra.mxu0 0.0
    %160 = vmatprep.subr.mxu0 0.0
    %161 = vmatpush1.msra.mxu0 0.0
    %162 = vmatprep.subr.mxu0 0.0
    %163 = vmatpush1.msra.mxu0 0.0
    %164 = vmatprep.subr.mxu0 0.0
    %165 = vmatpush1.msra.mxu0 0.0
    %166 = vmatprep.subr.mxu0 0.0
    %167 = vmatpush1.msra.mxu0 0.0
    %168 = vmatprep.subr.mxu0 0.0
    %169 = vmatpush1.msra.mxu0 0.0
    %170 = vmatprep.subr.mxu0 0.0
    %171 = vmatpush1.msra.mxu0 0.0
    %172 = vmatprep.subr.mxu0 0.0
    %173 = vmatpush1.msra.mxu0 %v144
    %174 = vmatprep.subr.mxu0 0.0
    %175 = vmatpush1.msra.mxu0 %v143
    %176 = vmatprep.subr.mxu0 0.0
    %177 = vmatpush1.msra.mxu0 %v142
    %178 = vmatprep.subr.mxu0 0.0
    %179 = vmatpush1.msra.mxu0 %v141
    %180 = vmatprep.subr.mxu0 0.0
    %181 = vmatpush1.msra.mxu0 %v140
    %182 = vmatprep.subr.mxu0 0.0
    %183 = vmatpush1.msra.mxu0 %v139
    %184 = vmatprep.subr.mxu0 0.0
    %185 = vmatpush1.msra.mxu0 %v138
    %186 = vmatprep.subr.mxu0 0.0
    %187 = vmatpush1.msra.mxu0 %v137
    %188 = vmatprep.subr.mxu0 0.0
    %189 = vmatpush2.msra.mxu0 0.0
    %190 = vmatprep.subr.mxu0 0.0
    %191 = vmatpush2.msra.mxu0 0.0
    %192 = vmatprep.subr.mxu0 0.0
    %193 = vmatpush2.msra.mxu0 0.0
    %194 = vmatprep.subr.mxu0 0.0
    %195 = vmatpush2.msra.mxu0 0.0
    %196 = vmatprep.subr.mxu0 0.0
    %197 = vmatpush2.msra.mxu0 0.0
    %198 = vmatprep.subr.mxu0 0.0
    %199 = vmatpush2.msra.mxu0 0.0
    %200 = vmatprep.subr.mxu0 0.0
    %201 = vmatpush2.msra.mxu0 0.0
    %202 = vmatprep.subr.mxu0 0.0
    %203 = vmatpush2.msra.mxu0 0.0
    %204 = vmatprep.subr.mxu0 0.0
    %205 = vmatpush2.msra.mxu0 0.0
    %206 = vmatprep.subr.mxu0 0.0
    %207 = vmatpush2.msra.mxu0 0.0
    %208 = vmatprep.subr.mxu0 0.0
    %209 = vmatpush2.msra.mxu0 0.0
    %210 = vmatprep.subr.mxu0 0.0
    %211 = vmatpush2.msra.mxu0 0.0
    %212 = vmatprep.subr.mxu0 0.0
    %213 = vmatpush2.msra.mxu0 0.0
    %214 = vmatprep.subr.mxu0 0.0
    %215 = vmatpush2.msra.mxu0 0.0
    %216 = vmatprep.subr.mxu0 0.0
    %217 = vmatpush2.msra.mxu0 0.0
    %218 = vmatprep.subr.mxu0 0.0
    %219 = vmatpush2.msra.mxu0 0.0
    %220 = vmatprep.mubr.f32.mxu0 0.0
    %221 = vmatmul.mubr.f32.gmra.mxu0 %v151
    %v222 = vpop.f32.mrf.mxu0
    %v223 = vadd.f32 %v148, %v222
    %v224 = vpop.f32.mrf.mxu0
    %225 = vmatprep.mubr.f32.mxu0 0.0
    %226 = vmatmul.mubr.f32.gmra.mxu0 %v154
    %v227 = vpop.f32.mrf.mxu0
    %v228 = vadd.f32 %v148, %v227
    %v229 = vpop.f32.mrf.mxu0
    %230 = vdwg.mxu0
    %v231 = vmax.f32 %v223, 0.0
    %v232 = vmax.f32 %v228, 0.0
    %v233 = vld [vmem:[%s5] sm:$0xff]
    %v234 = vld [vmem:[%s5 + $0x8] sm:$0xff]
    %v235 = vld [vmem:[%s5 + $0x10] sm:$0xff]
    %v236 = vld [vmem:[%s5 + $0x18] sm:$0xff]
    %v237 = vld [vmem:[%s5 + $0x20] sm:$0xff]
    %v238 = vld [vmem:[%s5 + $0x28] sm:$0xff]
    %v239 = vld [vmem:[%s5 + $0x30] sm:$0xff]
    %v240 = vld [vmem:[%s5 + $0x38] sm:$0xff]
    %v241 = vld [vmem:[%s7] sm:$0x1]
    %v243 = vlaneseq
    %v244 = vshrl.u32 %v243, 7
    %v245 = vsub.s32 0, %v244
    %v246 = vrot.slane %v241, %v245
    %v249 = vsel %vm149, %v231, 0
    %v252 = vsel %vm149, %v232, 0
    %254 = vmatprep.subr.mxu0 0.0
    %255 = vmatpush1.msra.mxu0 0.0
    %256 = vmatprep.subr.mxu0 0.0
    %257 = vmatpush1.msra.mxu0 0.0
    %258 = vmatprep.subr.mxu0 0.0
    %259 = vmatpush1.msra.mxu0 0.0
    %260 = vmatprep.subr.mxu0 0.0
    %261 = vmatpush1.msra.mxu0 0.0
    %262 = vmatprep.subr.mxu0 0.0
    %263 = vmatpush1.msra.mxu0 0.0
    %264 = vmatprep.subr.mxu0 0.0
    %265 = vmatpush1.msra.mxu0 0.0
    %266 = vmatprep.subr.mxu0 0.0
    %267 = vmatpush1.msra.mxu0 0.0
    %268 = vmatprep.subr.mxu0 0.0
    %269 = vmatpush1.msra.mxu0 0.0
    %270 = vmatprep.subr.mxu0 0.0
    %271 = vmatpush1.msra.mxu0 %v240
    %272 = vmatprep.subr.mxu0 0.0
    %273 = vmatpush1.msra.mxu0 %v239
    %274 = vmatprep.subr.mxu0 0.0
    %275 = vmatpush1.msra.mxu0 %v238
    %276 = vmatprep.subr.mxu0 0.0
    %277 = vmatpush1.msra.mxu0 %v237
    %278 = vmatprep.subr.mxu0 0.0
    %279 = vmatpush1.msra.mxu0 %v236
    %280 = vmatprep.subr.mxu0 0.0
    %281 = vmatpush1.msra.mxu0 %v235
    %282 = vmatprep.subr.mxu0 0.0
    %283 = vmatpush1.msra.mxu0 %v234
    %284 = vmatprep.subr.mxu0 0.0
    %285 = vmatpush1.msra.mxu0 %v233
    %286 = vmatprep.subr.mxu0 0.0
    %287 = vmatpush2.msra.mxu0 0.0
    %288 = vmatprep.subr.mxu0 0.0
    %289 = vmatpush2.msra.mxu0 0.0
    %290 = vmatprep.subr.mxu0 0.0
    %291 = vmatpush2.msra.mxu0 0.0
    %292 = vmatprep.subr.mxu0 0.0
    %293 = vmatpush2.msra.mxu0 0.0
    %294 = vmatprep.subr.mxu0 0.0
    %295 = vmatpush2.msra.mxu0 0.0
    %296 = vmatprep.subr.mxu0 0.0
    %297 = vmatpush2.msra.mxu0 0.0
    %298 = vmatprep.subr.mxu0 0.0
    %299 = vmatpush2.msra.mxu0 0.0
    %300 = vmatprep.subr.mxu0 0.0
    %301 = vmatpush2.msra.mxu0 0.0
    %302 = vmatprep.subr.mxu0 0.0
    %303 = vmatpush2.msra.mxu0 0.0
    %304 = vmatprep.subr.mxu0 0.0
    %305 = vmatpush2.msra.mxu0 0.0
    %306 = vmatprep.subr.mxu0 0.0
    %307 = vmatpush2.msra.mxu0 0.0
    %308 = vmatprep.subr.mxu0 0.0
    %309 = vmatpush2.msra.mxu0 0.0
    %310 = vmatprep.subr.mxu0 0.0
    %311 = vmatpush2.msra.mxu0 0.0
    %312 = vmatprep.subr.mxu0 0.0
    %313 = vmatpush2.msra.mxu0 0.0
    %314 = vmatprep.subr.mxu0 0.0
    %315 = vmatpush2.msra.mxu0 0.0
    %316 = vmatprep.subr.mxu0 0.0
    %317 = vmatpush2.msra.mxu0 0.0
    %318 = vmatprep.mubr.f32.mxu0 0.0
    %319 = vmatmul.mubr.f32.gmra.mxu0 %v249
    %v320 = vpop.f32.mrf.mxu0
    %v321 = vadd.f32 %v246, %v320
    %v322 = vpop.f32.mrf.mxu0
    %323 = vmatprep.mubr.f32.mxu0 0.0
    %324 = vmatmul.mubr.f32.gmra.mxu0 %v252
    %v325 = vpop.f32.mrf.mxu0
    %v326 = vadd.f32 %v246, %v325
    %v327 = vpop.f32.mrf.mxu0
    %328 = vdwg.mxu0
    %v329 = vld [vmem:[%s2] sm:$0xff]
    %331 = vrot.lane.b32.xlu0 %v326, 16
    %v332 = vpop.permute.xlu0 %331
    %335 = vrot.lane.b32.xlu0 %v329, 32
    %v336 = vpop.permute.xlu0 %335
    %vm338 = vcmask 130048
    %v339 = vsel %vm338, %v321, %v332
    %v340 = vsel %vm53, %v339, %v336
    %v341 = vld [vmem:[%s8] sm:$0xff]
    %v342 = vld [vmem:[%s8 + $0x8] sm:$0xff]
    %v343 = vld [vmem:[%s8 + $0x10] sm:$0xff]
    %v344 = vld [vmem:[%s8 + $0x18] sm:$0xff]
    %v345 = vld [vmem:[%s8 + $0x20] sm:$0xff]
    %v346 = vld [vmem:[%s9] sm:$0x1]
    %v348 = vlaneseq
    %v349 = vshrl.u32 %v348, 7
    %v350 = vsub.s32 0, %v349
    %v351 = vrot.slane %v346, %v350
    %vm353 = vcmask 326656
    %v355 = vsel %vm353, %v340, 0
    %357 = vmatprep.subr.mxu0 0.0
    %358 = vmatpush1.msra.mxu0 0.0
    %359 = vmatprep.subr.mxu0 0.0
    %360 = vmatpush1.msra.mxu0 0.0
    %361 = vmatprep.subr.mxu0 0.0
    %362 = vmatpush1.msra.mxu0 0.0
    %363 = vmatprep.subr.mxu0 0.0
    %364 = vmatpush1.msra.mxu0 0.0
    %365 = vmatprep.subr.mxu0 0.0
    %366 = vmatpush1.msra.mxu0 0.0
    %367 = vmatprep.subr.mxu0 0.0
    %368 = vmatpush1.msra.mxu0 0.0
    %369 = vmatprep.subr.mxu0 0.0
    %370 = vmatpush1.msra.mxu0 0.0
    %371 = vmatprep.subr.mxu0 0.0
    %372 = vmatpush1.msra.mxu0 0.0
    %373 = vmatprep.subr.mxu0 0.0
    %374 = vmatpush1.msra.mxu0 0.0
    %375 = vmatprep.subr.mxu0 0.0
    %376 = vmatpush1.msra.mxu0 0.0
    %377 = vmatprep.subr.mxu0 0.0
    %378 = vmatpush1.msra.mxu0 0.0
    %379 = vmatprep.subr.mxu0 0.0
    %380 = vmatpush1.msra.mxu0 %v345
    %381 = vmatprep.subr.mxu0 0.0
    %382 = vmatpush1.msra.mxu0 %v344
    %383 = vmatprep.subr.mxu0 0.0
    %384 = vmatpush1.msra.mxu0 %v343
    %385 = vmatprep.subr.mxu0 0.0
    %386 = vmatpush1.msra.mxu0 %v342
    %387 = vmatprep.subr.mxu0 0.0
    %388 = vmatpush1.msra.mxu0 %v341
    %389 = vmatprep.subr.mxu0 0.0
    %390 = vmatpush2.msra.mxu0 0.0
    %391 = vmatprep.subr.mxu0 0.0
    %392 = vmatpush2.msra.mxu0 0.0
    %393 = vmatprep.subr.mxu0 0.0
    %394 = vmatpush2.msra.mxu0 0.0
    %395 = vmatprep.subr.mxu0 0.0
    %396 = vmatpush2.msra.mxu0 0.0
    %397 = vmatprep.subr.mxu0 0.0
    %398 = vmatpush2.msra.mxu0 0.0
    %399 = vmatprep.subr.mxu0 0.0
    %400 = vmatpush2.msra.mxu0 0.0
    %401 = vmatprep.subr.mxu0 0.0
    %402 = vmatpush2.msra.mxu0 0.0
    %403 = vmatprep.subr.mxu0 0.0
    %404 = vmatpush2.msra.mxu0 0.0
    %405 = vmatprep.subr.mxu0 0.0
    %406 = vmatpush2.msra.mxu0 0.0
    %407 = vmatprep.subr.mxu0 0.0
    %408 = vmatpush2.msra.mxu0 0.0
    %409 = vmatprep.subr.mxu0 0.0
    %410 = vmatpush2.msra.mxu0 0.0
    %411 = vmatprep.subr.mxu0 0.0
    %412 = vmatpush2.msra.mxu0 0.0
    %413 = vmatprep.subr.mxu0 0.0
    %414 = vmatpush2.msra.mxu0 0.0
    %415 = vmatprep.subr.mxu0 0.0
    %416 = vmatpush2.msra.mxu0 0.0
    %417 = vmatprep.subr.mxu0 0.0
    %418 = vmatpush2.msra.mxu0 0.0
    %419 = vmatprep.subr.mxu0 0.0
    %420 = vmatpush2.msra.mxu0 0.0
    %421 = vmatprep.mubr.f32.mxu0 0.0
    %422 = vmatmul.mubr.f32.gmra.mxu0 %v355
    %v423 = vpop.f32.mrf.mxu0
    %v424 = vadd.f32 %v351, %v423
    %v425 = vpop.f32.mrf.mxu0
    %426 = vdwg.mxu0
    %v427 = vmax.f32 %v424, 0.0
    %v428 = vld [vmem:[%s10] sm:$0xff]
    %v429 = vld [vmem:[%s10 + $0x8] sm:$0xff]
    %v430 = vld [vmem:[%s10 + $0x10] sm:$0xff]
    %v431 = vld [vmem:[%s10 + $0x18] sm:$0xff]
    %v432 = vld [vmem:[%s10 + $0x20] sm:$0xff]
    %v433 = vld [vmem:[%s10 + $0x28] sm:$0xff]
    %v434 = vld [vmem:[%s10 + $0x30] sm:$0xff]
    %v435 = vld [vmem:[%s10 + $0x38] sm:$0xff]
    %v436 = vld [vmem:[%s10 + $0x40] sm:$0xff]
    %v437 = vld [vmem:[%s10 + $0x48] sm:$0xff]
    %v438 = vld [vmem:[%s10 + $0x50] sm:$0xff]
    %v439 = vld [vmem:[%s10 + $0x58] sm:$0xff]
    %v440 = vld [vmem:[%s10 + $0x60] sm:$0xff]
    %v441 = vld [vmem:[%s10 + $0x68] sm:$0xff]
    %v442 = vld [vmem:[%s10 + $0x70] sm:$0xff]
    %v443 = vld [vmem:[%s10 + $0x78] sm:$0xff]
    %v444 = vld [vmem:[%s11] sm:$0x1]
    %v446 = vlaneseq
    %v447 = vshrl.u32 %v446, 7
    %v448 = vsub.s32 0, %v447
    %v449 = vrot.slane %v444, %v448
    %451 = vmatprep.subr.mxu0 0.0
    %452 = vmatpush1.msra.mxu0 %v443
    %453 = vmatprep.subr.mxu0 0.0
    %454 = vmatpush1.msra.mxu0 %v442
    %455 = vmatprep.subr.mxu0 0.0
    %456 = vmatpush1.msra.mxu0 %v441
    %457 = vmatprep.subr.mxu0 0.0
    %458 = vmatpush1.msra.mxu0 %v440
    %459 = vmatprep.subr.mxu0 0.0
    %460 = vmatpush1.msra.mxu0 %v439
    %461 = vmatprep.subr.mxu0 0.0
    %462 = vmatpush1.msra.mxu0 %v438
    %463 = vmatprep.subr.mxu0 0.0
    %464 = vmatpush1.msra.mxu0 %v437
    %465 = vmatprep.subr.mxu0 0.0
    %466 = vmatpush1.msra.mxu0 %v436
    %467 = vmatprep.subr.mxu0 0.0
    %468 = vmatpush1.msra.mxu0 %v435
    %469 = vmatprep.subr.mxu0 0.0
    %470 = vmatpush1.msra.mxu0 %v434
    %471 = vmatprep.subr.mxu0 0.0
    %472 = vmatpush1.msra.mxu0 %v433
    %473 = vmatprep.subr.mxu0 0.0
    %474 = vmatpush1.msra.mxu0 %v432
    %475 = vmatprep.subr.mxu0 0.0
    %476 = vmatpush1.msra.mxu0 %v431
    %477 = vmatprep.subr.mxu0 0.0
    %478 = vmatpush1.msra.mxu0 %v430
    %479 = vmatprep.subr.mxu0 0.0
    %480 = vmatpush1.msra.mxu0 %v429
    %481 = vmatprep.subr.mxu0 0.0
    %482 = vmatpush1.msra.mxu0 %v428
    %483 = vmatprep.subr.mxu0 0.0
    %484 = vmatpush2.msra.mxu0 0.0
    %485 = vmatprep.subr.mxu0 0.0
    %486 = vmatpush2.msra.mxu0 0.0
    %487 = vmatprep.subr.mxu0 0.0
    %488 = vmatpush2.msra.mxu0 0.0
    %489 = vmatprep.subr.mxu0 0.0
    %490 = vmatpush2.msra.mxu0 0.0
    %491 = vmatprep.subr.mxu0 0.0
    %492 = vmatpush2.msra.mxu0 0.0
    %493 = vmatprep.subr.mxu0 0.0
    %494 = vmatpush2.msra.mxu0 0.0
    %495 = vmatprep.subr.mxu0 0.0
    %496 = vmatpush2.msra.mxu0 0.0
    %497 = vmatprep.subr.mxu0 0.0
    %498 = vmatpush2.msra.mxu0 0.0
    %499 = vmatprep.subr.mxu0 0.0
    %500 = vmatpush2.msra.mxu0 0.0
    %501 = vmatprep.subr.mxu0 0.0
    %502 = vmatpush2.msra.mxu0 0.0
    %503 = vmatprep.subr.mxu0 0.0
    %504 = vmatpush2.msra.mxu0 0.0
    %505 = vmatprep.subr.mxu0 0.0
    %506 = vmatpush2.msra.mxu0 0.0
    %507 = vmatprep.subr.mxu0 0.0
    %508 = vmatpush2.msra.mxu0 0.0
    %509 = vmatprep.subr.mxu0 0.0
    %510 = vmatpush2.msra.mxu0 0.0
    %511 = vmatprep.subr.mxu0 0.0
    %512 = vmatpush2.msra.mxu0 0.0
    %513 = vmatprep.subr.mxu0 0.0
    %514 = vmatpush2.msra.mxu0 0.0
    %515 = vmatprep.mubr.f32.mxu0 0.0
    %516 = vmatmul.mubr.f32.gmra.mxu0 %v427
    %v517 = vpop.f32.mrf.mxu0
    %v518 = vadd.f32 %v449, %v517
    %v519 = vpop.f32.mrf.mxu0
    %520 = vdwg.mxu0
    %521 = vrot.lane.b32.xlu0 %v326, 24
    %v522 = vpop.permute.xlu0 %521
    %vm524 = vcmask 195584
    %v525 = vsel %vm524, %v518, %v522
    %526 = vst.msk [vmem:[#allocation2] sm:$0xff] %vm353, %v525
    // Predicated region
    $region50: #{tpu_custom_call.1} parent=1 // pred_check
      _
    $region51: #{tpu_custom_call.1} parent=1 // pred_check_branch
      %528 = sbr.rel (0) target = $region53
    $region52: #{tpu_custom_call.1} parent=1 // pred_region
      %s530 = ssub.s32 128, 128
      %531 = vsyncadd [#allocation3], %s530
      %s533 = sshll.u32 [#allocation2], 4
      %s534 = int_to_ptr.vmem [resolvable:$true] %s533
      %536 = dma.vmem_to_hbm [thread:$0]  %s534, 128, %s12, [#allocation3]
    $region53: #{tpu_custom_call.1} parent=1 // pred_fallthru
      _
    // Predicated region
    $region54: #{tpu_custom_call.1} parent=1 // pred_check
      _
    $region55: #{tpu_custom_call.1} parent=1 // pred_check_branch
      %538 = sbr.rel (0) target = $region57
    $region56: #{tpu_custom_call.1} parent=1 // pred_region
      %539 = dma.done [#allocation3], 128
    $region57: #{tpu_custom_call.1} parent=1 // pred_fallthru
      _
    %540 = vsyncpa [#allocation3], 1

</llo_original>
